<compile_context>
chip_gen: v6e
topology: v6e:2x2x1
jax: 0.10.0
libtpu: 0.0.40
codegen_flags: <defaults>
</compile_context>

<pallas_src>
import jax
import jax.numpy as jnp
from jax.experimental import pallas as pl
from jax.experimental.pallas import tpu as pltpu


def _round_up(x: int, m: int) -> int:
    return ((x + m - 1) // m) * m


def _vmem_budget_bytes() -> int:
    """~75% of physical per-core VMEM (≈96 MiB v5e/v6e, ≈48 MiB v7x)."""
    try:
        cap = int(pltpu.get_tpu_info().vmem_capacity_bytes)
    except Exception:
        cap = 128 << 20
    return (cap * 3) // 4


def hypernet_kernel(strength_ref, x_ref, w1_ref, b1_ref, w2_ref, b2_ref, o_ref):
    # strength_ref: SMEM (1,1) f32 scalar.
    # x_ref / o_ref: [TILE_N, DP] tiles streamed along the row grid.
    # w1_ref [DP, HP] bf16, b1_ref [1, HP] f32, w2_ref [HP, DP] bf16,
    # b2_ref [1, DP] f32 -- resident (constant index_map, single-buffered).
    h = jnp.dot(x_ref[...].astype(jnp.bfloat16), w1_ref[...],
                preferred_element_type=jnp.float32)              # [TILE_N, HP] f32 acc
    h = jnp.maximum(h + b1_ref[...], 0.0)                        # bias + ReLU
    y = jnp.dot(h.astype(jnp.bfloat16), w2_ref[...],
                preferred_element_type=jnp.float32)              # [TILE_N, DP] f32 acc
    y = y + b2_ref[...]
    # Residual read directly at the store: no TILE_N x DP f32 temp kept live
    # across the two matmuls.
    o_ref[...] = (x_ref[...] + y * strength_ref[0, 0]).astype(o_ref.dtype)


def prepare_hypernetwork_params(w1, b1, w2, b2):
    """One-time weight preparation (hoisted out of the per-call hot path).

    w1: [hidden, dim] (torch [out, in]), b1: [hidden],
    w2: [dim, hidden], b2: [dim].
    Returns transposed, 128-lane-padded bf16 weights + padded f32 biases."""
    hidden, dim = w1.shape
    dp = _round_up(dim, 128)
    hp = _round_up(hidden, 128)

    w1_t = jnp.asarray(w1, jnp.float32).T        # [dim, hidden]
    w2_t = jnp.asarray(w2, jnp.float32).T        # [hidden, dim]
    if dp != dim or hp != hidden:
        w1_t = jnp.pad(w1_t, ((0, dp - dim), (0, hp - hidden)))
        w2_t = jnp.pad(w2_t, ((0, hp - hidden), (0, dp - dim)))
    b1_p = jnp.asarray(b1, jnp.float32)
    b2_p = jnp.asarray(b2, jnp.float32)
    if hp != hidden:
        b1_p = jnp.pad(b1_p, (0, hp - hidden))
    if dp != dim:
        b2_p = jnp.pad(b2_p, (0, dp - dim))

    return dict(dim=dim, hidden=hidden, dp=dp, hp=hp,
                w1=w1_t.astype(jnp.bfloat16), b1=b1_p.reshape(1, hp),
                w2=w2_t.astype(jnp.bfloat16), b2=b2_p.reshape(1, dp))


def hypernetwork_forward(x, params, strength, *, tile_n=None, out_dtype=None):
    """x: [N, dim]; params from prepare_hypernetwork_params; strength scalar.
    Returns x + (relu(x @ W1 + b1) @ W2 + b2) * strength (bf16 MXU operands,
    f32 accumulation / bias / residual)."""
    n, dim = x.shape
    assert dim == params["dim"], "x feature dim does not match prepared weights"
    dp, hp = params["dp"], params["hp"]
    out_dtype = x.dtype if out_dtype is None else out_dtype
    out_bytes = jnp.dtype(out_dtype).itemsize

    # Row tile: multiple of 16 (bf16 sublane packing); shrink for small N so we
    # keep >= ~4 grid steps (megacore sharding + x/out DMA pipelining).
    if tile_n is None:
        tile_n = 256 if dp >= 1024 else 512
    tn = min(_round_up(tile_n, 16), _round_up(pl.cdiv(n, 4), 16))
    tn = max(tn, 16)
    grid = (pl.cdiv(n, tn),)

    # Feature pad only if dim is not lane-aligned (common SD dims 640/768/1024/
    # 1280 need none); NO row padding -- Pallas masks the ragged last block.
    x_p = x.astype(jnp.float32)
    if dp != dim:
        x_p = jnp.pad(x_p, ((0, 0), (0, dp - dim)))

    strength_arr = jnp.asarray(strength, jnp.float32).reshape(1, 1)

    # VMEM: x/out tiles double-buffered, weights/biases single-buffered.
    est = (2 * tn * dp * 4              # x tiles (double-buffered)
           + 2 * tn * dp * out_bytes    # out tiles (double-buffered)
           + 2 * dp * hp * 2            # bf16 weights (single-buffered)
           + (hp + dp) * 4              # biases
           + tn * hp * 4)               # hidden activation
    vmem_limit = int(min(max(2 * est, 16 << 20), _vmem_budget_bytes()))

    cost = pl.CostEstimate(
        flops=4 * n * dp * hp,
        transcendentals=0,
        bytes_accessed=(n * dp * 4 + n * dp * out_bytes
                        + 2 * dp * hp * 2 + (hp + dp) * 4 + 4),
    )

    resident = dict(pipeline_mode=pl.Buffered(1))   # fetched once, one buffer
    out_p = pl.pallas_call(
        hypernet_kernel,
        out_shape=jax.ShapeDtypeStruct((n, dp), out_dtype),
        grid=grid,
        in_specs=[
            pl.BlockSpec(memory_space=pltpu.MemorySpace.SMEM),       # strength
            pl.BlockSpec((tn, dp), lambda i: (i, 0)),                # x (streamed)
            pl.BlockSpec((dp, hp), lambda i: (0, 0), **resident),    # w1
            pl.BlockSpec((1, hp), lambda i: (0, 0), **resident),     # b1
            pl.BlockSpec((hp, dp), lambda i: (0, 0), **resident),    # w2
            pl.BlockSpec((1, dp), lambda i: (0, 0), **resident),     # b2
        ],
        out_specs=pl.BlockSpec((tn, dp), lambda i: (i, 0)),
        compiler_params=pltpu.CompilerParams(
            dimension_semantics=("parallel",),
            vmem_limit_bytes=vmem_limit,
        ),
        cost_estimate=cost,
    )(strength_arr, x_p, params["w1"], params["b1"], params["w2"], params["b2"])

    return out_p if dp == dim else out_p[:, :dim]


if __name__ == "__main__":
    # Small shapes consistent with the module: dim=32, layer_structure=[1,2,1]
    # => Linear(32->64) -> ReLU -> Linear(64->32); 24 token rows;
    # hypernetwork_strength = 0.5.  n=24 with tn=16 exercises a ragged 2-step grid.
    dim = 32
    hidden = 2 * dim
    n_tokens = 24
    strength = 0.5  # model['hypernetwork_strength']

    key = jax.random.PRNGKey(0)
    kx, kw1, kb1, kw2, kb2 = jax.random.split(key, 5)

    x = jax.random.normal(kx, (n_tokens, dim), dtype=jnp.float32)

    # Deterministic parameter init (nn.Linear-style uniform bounds), torch [out, in] layout.
    bound1 = 1.0 / (dim ** 0.5)
    w1 = jax.random.uniform(kw1, (hidden, dim), jnp.float32, -bound1, bound1)
    b1 = jax.random.uniform(kb1, (hidden,), jnp.float32, -bound1, bound1)
    bound2 = 1.0 / (hidden ** 0.5)
    w2 = jax.random.uniform(kw2, (dim, hidden), jnp.float32, -bound2, bound2)
    b2 = jax.random.uniform(kb2, (dim,), jnp.float32, -bound2, bound2)

    params = prepare_hypernetwork_params(w1, b1, w2, b2)   # one-time weight prep
    out = hypernetwork_forward(x, params, strength)
    out = jax.block_until_ready(out)

    # Pure-JAX reference mirroring the kernel's mixed precision (bf16 matmul
    # operands, f32 accumulation, f32 bias / residual / strength).
    # TODO(synk): kernel uses bf16 MXU operands; exact-fp32 PyTorch parity would
    # need f32 matmuls (much slower on TPU) -- the tolerance reflects that choice.
    h_ref = jnp.maximum(
        jnp.dot(x.astype(jnp.bfloat16), w1.T.astype(jnp.bfloat16),
                preferred_element_type=jnp.float32) + b1, 0.0)
    y_ref = jnp.dot(h_ref.astype(jnp.bfloat16), w2.T.astype(jnp.bfloat16),
                    preferred_element_type=jnp.float32) + b2
    ref = x + y_ref * strength

    assert out.shape == ref.shape
    assert jnp.allclose(out, ref, atol=1e-4, rtol=1e-4), "mismatch vs reference"

    print("KERNEL_OK")
</pallas_src>

<mosaic_0001>
module attributes {stable_mosaic.version = 11 : i64} {
  func.func @hypernet_kernel(%arg0: i32, %arg1: memref<1x1xf32, #tpu.memory_space<smem>>, %arg2: memref<16x128xf32, #tpu.memory_space<vmem>>, %arg3: memref<128x128xbf16, #tpu.memory_space<vmem>>, %arg4: memref<1x128xf32, #tpu.memory_space<vmem>>, %arg5: memref<128x128xbf16, #tpu.memory_space<vmem>>, %arg6: memref<1x128xf32, #tpu.memory_space<vmem>>, %arg7: memref<16x128xf32, #tpu.memory_space<vmem>>) attributes {dimension_semantics = [#tpu.dimension_semantics<parallel>], iteration_bounds = array<i64: 2>, scalar_prefetch = 0 : i64, scratch_operands = 0 : i64, tpu.core_type = #tpu.core_type<tc>, window_params = [{transform_indices = @transform_0, window_bounds = array<i64: 1, 1>}, {transform_indices = @transform_1, window_bounds = array<i64: 16, 128>}, {pipeline_mode = #tpu.pipeline_mode<synchronous>, transform_indices = @transform_2, window_bounds = array<i64: 128, 128>}, {pipeline_mode = #tpu.pipeline_mode<synchronous>, transform_indices = @transform_3, window_bounds = array<i64: 1, 128>}, {pipeline_mode = #tpu.pipeline_mode<synchronous>, transform_indices = @transform_4, window_bounds = array<i64: 128, 128>}, {pipeline_mode = #tpu.pipeline_mode<synchronous>, transform_indices = @transform_5, window_bounds = array<i64: 1, 128>}, {transform_indices = @transform_6, window_bounds = array<i64: 16, 128>}]} {
    %c0 = arith.constant 0 : index
    %c0_0 = arith.constant 0 : index
    %0 = vector.load %arg2[%c0, %c0_0] : memref<16x128xf32, #tpu.memory_space<vmem>>, vector<16x128xf32>
    %1 = arith.truncf %0 : vector<16x128xf32> to vector<16x128xbf16>
    %c0_1 = arith.constant 0 : index
    %c0_2 = arith.constant 0 : index
    %2 = vector.load %arg3[%c0_1, %c0_2] : memref<128x128xbf16, #tpu.memory_space<vmem>>, vector<128x128xbf16>
    %cst = arith.constant dense<0.000000e+00> : vector<16x128xf32>
    %3 = tpu.matmul %1, %2, %cst {dimension_numbers = #tpu.dot_dimension_numbers<[1], [0], [0], [1], [0, 0, 1, 1], [], []>} : vector<16x128xbf16>, vector<128x128xbf16>, vector<16x128xf32> -> vector<16x128xf32>
    %c0_3 = arith.constant 0 : index
    %c0_4 = arith.constant 0 : index
    %4 = vector.load %arg4[%c0_3, %c0_4] : memref<1x128xf32, #tpu.memory_space<vmem>>, vector<1x128xf32>
    %5 = vector.broadcast %4 : vector<1x128xf32> to vector<16x128xf32>
    %6 = arith.addf %3, %5 : vector<16x128xf32>
    %cst_5 = arith.constant 0.000000e+00 : f32
    %7 = vector.broadcast %cst_5 : f32 to vector<16x128xf32>
    %8 = arith.maximumf %6, %7 : vector<16x128xf32>
    %9 = arith.truncf %8 : vector<16x128xf32> to vector<16x128xbf16>
    %c0_6 = arith.constant 0 : index
    %c0_7 = arith.constant 0 : index
    %10 = vector.load %arg5[%c0_6, %c0_7] : memref<128x128xbf16, #tpu.memory_space<vmem>>, vector<128x128xbf16>
    %cst_8 = arith.constant dense<0.000000e+00> : vector<16x128xf32>
    %11 = tpu.matmul %9, %10, %cst_8 {dimension_numbers = #tpu.dot_dimension_numbers<[1], [0], [0], [1], [0, 0, 1, 1], [], []>} : vector<16x128xbf16>, vector<128x128xbf16>, vector<16x128xf32> -> vector<16x128xf32>
    %c0_9 = arith.constant 0 : index
    %c0_10 = arith.constant 0 : index
    %12 = vector.load %arg6[%c0_9, %c0_10] : memref<1x128xf32, #tpu.memory_space<vmem>>, vector<1x128xf32>
    %13 = vector.broadcast %12 : vector<1x128xf32> to vector<16x128xf32>
    %14 = arith.addf %11, %13 : vector<16x128xf32>
    %c0_11 = arith.constant 0 : index
    %c0_12 = arith.constant 0 : index
    %15 = vector.load %arg2[%c0_11, %c0_12] : memref<16x128xf32, #tpu.memory_space<vmem>>, vector<16x128xf32>
    %c0_13 = arith.constant 0 : index
    %c0_14 = arith.constant 0 : index
    %16 = memref.load %arg1[%c0_13, %c0_14] : memref<1x1xf32, #tpu.memory_space<smem>>
    %17 = vector.broadcast %16 : f32 to vector<16x128xf32>
    %18 = arith.mulf %14, %17 : vector<16x128xf32>
    %19 = arith.addf %15, %18 : vector<16x128xf32>
    %c0_15 = arith.constant 0 : index
    %c0_16 = arith.constant 0 : index
    %20 = vector.load %arg7[%c0_15, %c0_16] : memref<16x128xf32, #tpu.memory_space<vmem>>, vector<16x128xf32>
    tpu.vector_store %arg7[%c0_15, %c0_16], %19 {strides = array<i32>} : memref<16x128xf32, #tpu.memory_space<vmem>>, vector<16x128xf32>,
    return
  }
  func.func @transform_0(%arg0: i32) -> (i32, i32) {
    %c0_i32 = arith.constant 0 : i32
    %c0_i32_0 = arith.constant 0 : i32
    %c0_i32_1 = arith.constant 0 : i32
    return %c0_i32, %c0_i32_0 : i32, i32
  }
  func.func @transform_1(%arg0: i32) -> (i32, i32) {
    %c0_i32 = arith.constant 0 : i32
    %c0_i32_0 = arith.constant 0 : i32
    return %arg0, %c0_i32 : i32, i32
  }
  func.func @transform_2(%arg0: i32) -> (i32, i32) {
    %c0_i32 = arith.constant 0 : i32
    %c0_i32_0 = arith.constant 0 : i32
    %c0_i32_1 = arith.constant 0 : i32
    return %c0_i32, %c0_i32_0 : i32, i32
  }
  func.func @transform_3(%arg0: i32) -> (i32, i32) {
    %c0_i32 = arith.constant 0 : i32
    %c0_i32_0 = arith.constant 0 : i32
    %c0_i32_1 = arith.constant 0 : i32
    return %c0_i32, %c0_i32_0 : i32, i32
  }
  func.func @transform_4(%arg0: i32) -> (i32, i32) {
    %c0_i32 = arith.constant 0 : i32
    %c0_i32_0 = arith.constant 0 : i32
    %c0_i32_1 = arith.constant 0 : i32
    return %c0_i32, %c0_i32_0 : i32, i32
  }
  func.func @transform_5(%arg0: i32) -> (i32, i32) {
    %c0_i32 = arith.constant 0 : i32
    %c0_i32_0 = arith.constant 0 : i32
    %c0_i32_1 = arith.constant 0 : i32
    return %c0_i32, %c0_i32_0 : i32, i32
  }
  func.func @transform_6(%arg0: i32) -> (i32, i32) {
    %c0_i32 = arith.constant 0 : i32
    %c0_i32_0 = arith.constant 0 : i32
    return %arg0, %c0_i32 : i32, i32
  }
}

</mosaic_0001>

<llo_original>
// kernel: tpu_custom_call.1
$region0: #{tpu_custom_call.1}
  #allocation0 [shape = 'u32[]', space=smem, size = 0x4, offset = 0x4, fixed_abs, tag = 'smem constant byte address 0x4 - core index']
  #allocation1 [shape = 'u32[144,128]{1,0:T(1,128)}', space=vmem, size = 0x12000, scoped, tag = 'internal scratch']
  #allocation2 [shape = 'f32[1,1]{1,0:T(1,128)S(6)}', space=smem, size = 0x200, scoped, tag = 'scoped memory for tpu_custom_call.1']
  %s0 = inlined_call_operand.<no memory space> [shape: f32[1,1], index: 0, kind: input, shape index: {}]
  %s1 = inlined_call_operand.hbm [shape: f32[24,128], index: 1, kind: input, shape index: {}]
  %s2 = inlined_call_operand.hbm [shape: bf16[128,128], index: 2, kind: input, shape index: {}]
  %s3 = inlined_call_operand.vmem [shape: f32[1,128], index: 3, kind: input, shape index: {}]
  %s4 = inlined_call_operand.hbm [shape: bf16[128,128], index: 4, kind: input, shape index: {}]
  %s5 = inlined_call_operand.vmem [shape: f32[1,128], index: 5, kind: input, shape index: {}]
  %s6 = inlined_call_operand.hbm [shape: f32[24,128], index: 6, kind: output, shape index: {}]
  %s7 = sld [smem:[#allocation0]]
  $region69: #{tpu_custom_call.1} parent=0
    _
  %s9 = ssub.s32 1, %s7
  %s10 = scalar_select 0, %s9, %s7
  %11 = sst [smem:[#allocation2]] %s0
  $region1: #{tpu_custom_call.1} parent=0
    #allocation3 [shape = 'u8[16384]{0}', space=vmem, size = 0x4000, scoped, tag = 'input window, operand 1']
    #allocation4 [shape = 's32[2]{0}', space=sflag, size = 0x8, scoped, tag = 'scoped memory for tpu_custom_call.1']
    #allocation5 [shape = 's32[2]{0}', space=sflag, size = 0x8, scoped, tag = 'scoped memory for tpu_custom_call.1']
    #allocation6 [shape = 'u8[32768]{0}', space=vmem, size = 0x8000, scoped, tag = 'input window, operand 2, single buffered']
    #allocation7 [shape = 's32[1]{0}', space=sflag, size = 0x4, scoped, tag = 'scoped memory for tpu_custom_call.1']
    #allocation8 [shape = 'u8[32768]{0}', space=vmem, size = 0x8000, scoped, tag = 'input window, operand 4, single buffered']
    #allocation9 [shape = 'u8[16384]{0}', space=vmem, size = 0x4000, scoped, tag = 'output window, operand 0']
    %12 = vsyncpa [#allocation4], 0
    %s13 = scalar_lea.sflag [#allocation4], 1
    %14 = vsyncpa %s13, 0
    %15 = vsyncpa [#allocation7], 0
    %16 = vsyncpa [#allocation5], 0
    %s17 = scalar_lea.sflag [#allocation5], 1
    %18 = vsyncpa %s17, 0
    loop: start=0, step=1, limit=4
    $region2: #{tpu_custom_call.1} parent=1 // loop_pre_header
      _
    $region3: #{tpu_custom_call.1} parent=1 // loop_header
      %s20 = sphi 0, %s24
      %p21 = scmp.ge.s32.totalorder %s20, 4
      %s28 = sphi 0, %s28
      %s30 = sphi 0, %s28
      %s31 = sphi 0, %s30
      %s45 = sphi 0, %s31
      %s51 = sphi 0, %s53
      %s54 = sphi 0, %s51
      %s55 = sphi 0, %s54
      %s71 = sphi 0, %s55
      %s75 = sphi 0, %s75
      %s77 = sphi 0, %s75
      %s78 = sphi 0, %s77
      %s92 = sphi 0, %s78
      %s96 = sphi 0, %s96
      %s98 = sphi 0, %s96
      %s99 = sphi 0, %s98
      %s113 = sphi 0, %s99
      %s117 = sphi 0, %s117
      %s119 = sphi 0, %s117
      %s120 = sphi 0, %s119
      %s134 = sphi 0, %s120
      %s138 = sphi 0, %s138
      %s140 = sphi 0, %s138
      %s141 = sphi 0, %s140
      %s155 = sphi 0, %s141
      %s161 = sphi 0, %s163
      %s164 = sphi 0, %s161
      %s165 = sphi 0, %s164
      %s181 = sphi 0, %s165
    $region4: #{tpu_custom_call.1} parent=1 // loop_header_branch
      %23 = sbr.rel (%p21) target = $region8
    $region5: #{tpu_custom_call.1} parent=1 // loop_body
      %s25 = ssub.s32 %s20, 1
      %s26 = ssub.s32 %s20, 2
      %s27 = sadd.s32 %s20, 1
      %s29 = sadd.s32 %s28, 1
      %p32 = scmp.eq.s32.totalorder %s20, 1
      %p33 = scmp.ne.s32.totalorder %s28, %s30
      %p34 = scmp.eq.s32.totalorder %s20, 0
      %p35 = por %p33, %p34
      %p36 = scmp.ne.s32.totalorder %s28, %s30
      %p37 = scmp.eq.s32.totalorder %s25, 1
      %p38 = por %p36, %p37
      %p39 = scmp.ne.s32.totalorder %s30, %s31
      %p40 = scmp.eq.s32.totalorder %s25, 0
      %p41 = por %p39, %p40
      %p42 = scmp.ne.s32.totalorder %s30, %s31
      %p43 = scmp.eq.s32.totalorder %s26, 1
      %p44 = por %p42, %p43
      %p46 = scmp.ne.s32.totalorder %s31, %s45
      %p47 = scmp.eq.s32.totalorder %s26, 0
      %p48 = por %p46, %p47
      %s49 = ssub.s32 %s20, %s27
      %p50 = scmp.eq.s32.totalorder %s49, 0
      %s52 = sadd.s32 %s51, 1
      %s53 = scalar_select %p50, %s51, %s52
      %p56 = pneg %p50
      %p57 = scmp.eq.s32.totalorder %s20, 1
      %p58 = por %p56, %p57
      %p59 = scmp.ne.s32.totalorder %s51, %s54
      %p60 = scmp.eq.s32.totalorder %s20, 0
      %p61 = por %p59, %p60
      %p62 = scmp.ne.s32.totalorder %s51, %s54
      %p63 = scmp.eq.s32.totalorder %s25, 1
      %p64 = por %p62, %p63
      %p65 = scmp.ne.s32.totalorder %s54, %s55
      %p66 = scmp.eq.s32.totalorder %s25, 0
      %p67 = por %p65, %p66
      %p68 = scmp.ne.s32.totalorder %s54, %s55
      %p69 = scmp.eq.s32.totalorder %s26, 1
      %p70 = por %p68, %p69
      %p72 = scmp.ne.s32.totalorder %s55, %s71
      %p73 = scmp.eq.s32.totalorder %s26, 0
      %p74 = por %p72, %p73
      %s76 = sadd.s32 %s75, 1
      %p79 = scmp.eq.s32.totalorder %s20, 1
      %p80 = scmp.ne.s32.totalorder %s75, %s77
      %p81 = scmp.eq.s32.totalorder %s20, 0
      %p82 = por %p80, %p81
      %p83 = scmp.ne.s32.totalorder %s75, %s77
      %p84 = scmp.eq.s32.totalorder %s25, 1
      %p85 = por %p83, %p84
      %p86 = scmp.ne.s32.totalorder %s77, %s78
      %p87 = scmp.eq.s32.totalorder %s25, 0
      %p88 = por %p86, %p87
      %p89 = scmp.ne.s32.totalorder %s77, %s78
      %p90 = scmp.eq.s32.totalorder %s26, 1
      %p91 = por %p89, %p90
      %p93 = scmp.ne.s32.totalorder %s78, %s92
      %p94 = scmp.eq.s32.totalorder %s26, 0
      %p95 = por %p93, %p94
      %s97 = sadd.s32 %s96, 1
      %p100 = scmp.eq.s32.totalorder %s20, 1
      %p101 = scmp.ne.s32.totalorder %s96, %s98
      %p102 = scmp.eq.s32.totalorder %s20, 0
      %p103 = por %p101, %p102
      %p104 = scmp.ne.s32.totalorder %s96, %s98
      %p105 = scmp.eq.s32.totalorder %s25, 1
      %p106 = por %p104, %p105
      %p107 = scmp.ne.s32.totalorder %s98, %s99
      %p108 = scmp.eq.s32.totalorder %s25, 0
      %p109 = por %p107, %p108
      %p110 = scmp.ne.s32.totalorder %s98, %s99
      %p111 = scmp.eq.s32.totalorder %s26, 1
      %p112 = por %p110, %p111
      %p114 = scmp.ne.s32.totalorder %s99, %s113
      %p115 = scmp.eq.s32.totalorder %s26, 0
      %p116 = por %p114, %p115
      %s118 = sadd.s32 %s117, 1
      %p121 = scmp.eq.s32.totalorder %s20, 1
      %p122 = scmp.ne.s32.totalorder %s117, %s119
      %p123 = scmp.eq.s32.totalorder %s20, 0
      %p124 = por %p122, %p123
      %p125 = scmp.ne.s32.totalorder %s117, %s119
      %p126 = scmp.eq.s32.totalorder %s25, 1
      %p127 = por %p125, %p126
      %p128 = scmp.ne.s32.totalorder %s119, %s120
      %p129 = scmp.eq.s32.totalorder %s25, 0
      %p130 = por %p128, %p129
      %p131 = scmp.ne.s32.totalorder %s119, %s120
      %p132 = scmp.eq.s32.totalorder %s26, 1
      %p133 = por %p131, %p132
      %p135 = scmp.ne.s32.totalorder %s120, %s134
      %p136 = scmp.eq.s32.totalorder %s26, 0
      %p137 = por %p135, %p136
      %s139 = sadd.s32 %s138, 1
      %p142 = scmp.eq.s32.totalorder %s20, 1
      %p143 = scmp.ne.s32.totalorder %s138, %s140
      %p144 = scmp.eq.s32.totalorder %s20, 0
      %p145 = por %p143, %p144
      %p146 = scmp.ne.s32.totalorder %s138, %s140
      %p147 = scmp.eq.s32.totalorder %s25, 1
      %p148 = por %p146, %p147
      %p149 = scmp.ne.s32.totalorder %s140, %s141
      %p150 = scmp.eq.s32.totalorder %s25, 0
      %p151 = por %p149, %p150
      %p152 = scmp.ne.s32.totalorder %s140, %s141
      %p153 = scmp.eq.s32.totalorder %s26, 1
      %p154 = por %p152, %p153
      %p156 = scmp.ne.s32.totalorder %s141, %s155
      %p157 = scmp.eq.s32.totalorder %s26, 0
      %p158 = por %p156, %p157
      %s159 = ssub.s32 %s20, %s27
      %p160 = scmp.eq.s32.totalorder %s159, 0
      %s162 = sadd.s32 %s161, 1
      %s163 = scalar_select %p160, %s161, %s162
      %p166 = pneg %p160
      %p167 = scmp.eq.s32.totalorder %s20, 1
      %p168 = por %p166, %p167
      %p169 = scmp.ne.s32.totalorder %s161, %s164
      %p170 = scmp.eq.s32.totalorder %s20, 0
      %p171 = por %p169, %p170
      %p172 = scmp.ne.s32.totalorder %s161, %s164
      %p173 = scmp.eq.s32.totalorder %s25, 1
      %p174 = por %p172, %p173
      %p175 = scmp.ne.s32.totalorder %s164, %s165
      %p176 = scmp.eq.s32.totalorder %s25, 0
      %p177 = por %p175, %p176
      %p178 = scmp.ne.s32.totalorder %s164, %s165
      %p179 = scmp.eq.s32.totalorder %s26, 1
      %p180 = por %p178, %p179
      %p182 = scmp.ne.s32.totalorder %s165, %s181
      %p183 = scmp.eq.s32.totalorder %s26, 0
      %p184 = por %p182, %p183
      %p185 = scmp.le.s32.totalorder 1, %s20
      %p186 = scmp.lt.s32.totalorder %s20, 3
      %p187 = pnand %p185, %p186
      %p188 = pneg %p187
      // Predicated region
      $region9: #{tpu_custom_call.1} parent=5 // pred_check
        _
      $region10: #{tpu_custom_call.1} parent=5 // pred_check_branch
        %190 = sbr.rel (%p187) target = $region12
      $region11: #{tpu_custom_call.1} parent=5 // pred_region
        %s191 = ssub.s32 %s20, 1
        // Predicated region
        $region13: #{tpu_custom_call.1} parent=11 // pred_check
          %p192 = pneg %p41
        $region14: #{tpu_custom_call.1} parent=11 // pred_check_branch
          %194 = sbr.rel (%p192) target = $region16
        $region15: #{tpu_custom_call.1} parent=11 // pred_region
          _
        $region16: #{tpu_custom_call.1} parent=11 // pred_fallthru
          _
        // Predicated region
        $region17: #{tpu_custom_call.1} parent=11 // pred_check
          %p195 = pneg %p88
        $region18: #{tpu_custom_call.1} parent=11 // pred_check_branch
          %197 = sbr.rel (%p195) target = $region20
        $region19: #{tpu_custom_call.1} parent=11 // pred_region
          %s199 = ssub.s32 1024, 1024
          %200 = vsyncadd [#allocation7], %s199
          %s201 = sshll.u32 [#allocation6], 4
          %s202 = int_to_ptr.vmem [resolvable:$true] %s201
          %207 = dma.hbm_to_vmem [thread:$0]  %s2, 1024, %s202, [#allocation7], 64, 64, 4
        $region20: #{tpu_custom_call.1} parent=11 // pred_fallthru
          _
        // Predicated region
        $region21: #{tpu_custom_call.1} parent=11 // pred_check
          %p208 = pneg %p109
        $region22: #{tpu_custom_call.1} parent=11 // pred_check_branch
          %210 = sbr.rel (%p208) target = $region24
        $region23: #{tpu_custom_call.1} parent=11 // pred_region
          _
        $region24: #{tpu_custom_call.1} parent=11 // pred_fallthru
          _
        // Predicated region
        $region25: #{tpu_custom_call.1} parent=11 // pred_check
          %p211 = pneg %p130
        $region26: #{tpu_custom_call.1} parent=11 // pred_check_branch
          %213 = sbr.rel (%p211) target = $region28
        $region27: #{tpu_custom_call.1} parent=11 // pred_region
          %s215 = ssub.s32 1024, 1024
          %216 = vsyncadd [#allocation7], %s215
          %s217 = sshll.u32 [#allocation8], 4
          %s218 = int_to_ptr.vmem [resolvable:$true] %s217
          %223 = dma.hbm_to_vmem [thread:$0]  %s4, 1024, %s218, [#allocation7], 64, 64, 4
        $region28: #{tpu_custom_call.1} parent=11 // pred_fallthru
          _
        // Predicated region
        $region29: #{tpu_custom_call.1} parent=11 // pred_check
          %p224 = pneg %p151
        $region30: #{tpu_custom_call.1} parent=11 // pred_check_branch
          %226 = sbr.rel (%p224) target = $region32
        $region31: #{tpu_custom_call.1} parent=11 // pred_region
          _
        $region32: #{tpu_custom_call.1} parent=11 // pred_fallthru
          _
      $region12: #{tpu_custom_call.1} parent=5 // pred_fallthru
        _
      %p227 = scmp.lt.s32.totalorder %s20, 2
      // Predicated region
      $region33: #{tpu_custom_call.1} parent=5 // pred_check
        %p228 = pneg %p227
      $region34: #{tpu_custom_call.1} parent=5 // pred_check_branch
        %230 = sbr.rel (%p228) target = $region36
      $region35: #{tpu_custom_call.1} parent=5 // pred_region
        // Predicated region
        $region37: #{tpu_custom_call.1} parent=35 // pred_check
          %p231 = pneg %p61
        $region38: #{tpu_custom_call.1} parent=35 // pred_check_branch
          %233 = sbr.rel (%p231) target = $region40
        $region39: #{tpu_custom_call.1} parent=35 // pred_region
          %s234 = sand.u32 %s51, 1
          %s235 = scalar_lea.sflag [#allocation4], %s234
          %s236 = sand.u32 %s51, 1
          %s237 = smul.addr %s236, 16
          %s238 = scalar_lea.vmem [#allocation3], %s237
          %s239 = smul.u32 2, %s20
          %s240 = ssub.s32 3, %s239
          %p241 = scmp.lt.s32.totalorder %s240, 2
          %s242 = scalar_select %p241, %s240, 2
          %s243 = smul.u32 128, %s242
          %s245 = ssub.s32 256, %s243
          %246 = vsyncadd %s235, %s245
          %p247 = scmp.ne.s32.totalorder 0, %s243
          %s248 = smul.addr %s239, 128
          %s249 = scalar_lea.hbm %s1, %s248
          %s250 = smul.u32 8, %s242
          %s251 = sshll.u32 %s238, 4
          %s252 = int_to_ptr.vmem [resolvable:$true] %s251
          %s253 = sshll.u32 %s250, 4
          %257 = dma.hbm_to_vmem [thread:$0]  (%p247), %s249, %s253, %s252, %s235, 128, 128, 8
        $region40: #{tpu_custom_call.1} parent=35 // pred_fallthru
          _
      $region36: #{tpu_custom_call.1} parent=5 // pred_fallthru
        _
      %p258 = scmp.le.s32.totalorder 1, %s20
      %p259 = scmp.lt.s32.totalorder %s20, 3
      %p260 = pnand %p258, %p259
      %p261 = pneg %p260
      // Predicated region
      $region41: #{tpu_custom_call.1} parent=5 // pred_check
        _
      $region42: #{tpu_custom_call.1} parent=5 // pred_check_branch
        %263 = sbr.rel (%p260) target = $region44
      $region43: #{tpu_custom_call.1} parent=5 // pred_region
        %s264 = ssub.s32 %s20, 1
        %s265 = sand.u32 %s54, 1
        %s266 = scalar_lea.sflag [#allocation4], %s265
        %s267 = sand.u32 %s54, 1
        %s268 = smul.addr %s267, 16
        %s269 = scalar_lea.vmem [#allocation3], %s268
        // Predicated region
        $region45: #{tpu_custom_call.1} parent=43 // pred_check
          %p270 = pneg %p67
        $region46: #{tpu_custom_call.1} parent=43 // pred_check_branch
          %272 = sbr.rel (%p270) target = $region48
        $region47: #{tpu_custom_call.1} parent=43 // pred_region
          %273 = dma.done %s266, 256
        $region48: #{tpu_custom_call.1} parent=43 // pred_fallthru
          _
        // Predicated region
        $region49: #{tpu_custom_call.1} parent=43 // pred_check
          %p274 = pneg %p88
        $region50: #{tpu_custom_call.1} parent=43 // pred_check_branch
          %276 = sbr.rel (%p274) target = $region52
        $region51: #{tpu_custom_call.1} parent=43 // pred_region
          %277 = dma.done [#allocation7], 1024
        $region52: #{tpu_custom_call.1} parent=43 // pred_fallthru
          _
        // Predicated region
        $region53: #{tpu_custom_call.1} parent=43 // pred_check
          %p278 = pneg %p130
        $region54: #{tpu_custom_call.1} parent=43 // pred_check_branch
          %280 = sbr.rel (%p278) target = $region56
        $region55: #{tpu_custom_call.1} parent=43 // pred_region
          %281 = dma.done [#allocation7], 1024
        $region56: #{tpu_custom_call.1} parent=43 // pred_fallthru
          _
        %p282 = pneg %p41
        %p283 = pneg %p38
        %s284 = sand.u32 %s54, 1
        %s285 = scalar_lea.sflag [#allocation4], %s284
        %s286 = sand.u32 %s54, 1
        %s287 = smul.addr %s286, 16
        %s288 = scalar_lea.vmem [#allocation3], %s287
        %p289 = pneg %p67
        %p290 = pneg %p64
        %p291 = pneg %p88
        %p292 = pneg %p85
        %p293 = pneg %p109
        %p294 = pneg %p106
        %p295 = pneg %p130
        %p296 = pneg %p127
        %p297 = pneg %p151
        %p298 = pneg %p148
        %p299 = pneg %p177
        %p300 = pneg %p174
        %s301 = sand.u32 %s164, 1
        %s302 = scalar_lea.sflag [#allocation5], %s301
        %s303 = sand.u32 %s164, 1
        %s304 = smul.addr %s303, 16
        %s305 = scalar_lea.vmem [#allocation9], %s304
        %s306 = smul.u32 2, %s25
        %s307 = ssub.s32 3, %s306
        %p308 = scmp.lt.s32.totalorder %s307, 2
        %s309 = scalar_select %p308, %s307, 2
        %s310 = smul.u32 128, %s309
        %s311 = smul.u32 2, %s25
        %s312 = ssub.s32 3, %s311
        %p313 = scmp.lt.s32.totalorder %s312, 2
        %s314 = scalar_select %p313, %s312, 2
        %s315 = smul.u32 128, %s314
        %v317 = vld [vmem:[%s269] sm:$0xff]
        %v318 = vld [vmem:[%s269 + $0x8] sm:$0xff]
        %v319 = vpack.c.bf16 %v318, %v317
        %v320 = vld [vmem:[#allocation6] sm:$0xf]
        %v321 = vld [vmem:[#allocation6 + $0x4] sm:$0xf]
        %v322 = vld [vmem:[#allocation6 + $0x8] sm:$0xf]
        %v323 = vld [vmem:[#allocation6 + $0xc] sm:$0xf]
        %v324 = vld [vmem:[#allocation6 + $0x10] sm:$0xf]
        %v325 = vld [vmem:[#allocation6 + $0x14] sm:$0xf]
        %v326 = vld [vmem:[#allocation6 + $0x18] sm:$0xf]
        %v327 = vld [vmem:[#allocation6 + $0x1c] sm:$0xf]
        %v328 = vld [vmem:[#allocation6 + $0x20] sm:$0xf]
        %v329 = vld [vmem:[#allocation6 + $0x24] sm:$0xf]
        %v330 = vld [vmem:[#allocation6 + $0x28] sm:$0xf]
        %v331 = vld [vmem:[#allocation6 + $0x2c] sm:$0xf]
        %v332 = vld [vmem:[#allocation6 + $0x30] sm:$0xf]
        %v333 = vld [vmem:[#allocation6 + $0x34] sm:$0xf]
        %v334 = vld [vmem:[#allocation6 + $0x38] sm:$0xf]
        %v335 = vld [vmem:[#allocation6 + $0x3c] sm:$0xf]
        %v336 = vld [vmem:[%s3] sm:$0x1]
        %v338 = vlaneseq
        %v339 = vshrl.u32 %v338, 7
        %v340 = vsub.s32 0, %v339
        %v341 = vrot.slane %v336, %v340
        %v359 = vunpack.c.l.b16 %v320
        %v360 = vunpack.c.l.b16 %v321
        %v361 = vunpack.c.l.b16 %v322
        %v362 = vunpack.c.l.b16 %v323
        %v363 = vunpack.c.l.b16 %v324
        %v364 = vunpack.c.l.b16 %v325
        %v365 = vunpack.c.l.b16 %v326
        %v366 = vunpack.c.l.b16 %v327
        %v367 = vunpack.c.l.b16 %v328
        %v368 = vunpack.c.l.b16 %v329
        %v369 = vunpack.c.l.b16 %v330
        %v370 = vunpack.c.l.b16 %v331
        %v371 = vunpack.c.l.b16 %v332
        %v372 = vunpack.c.l.b16 %v333
        %v373 = vunpack.c.l.b16 %v334
        %v374 = vunpack.c.l.b16 %v335
        %v375 = vpack.c.b16 %v360, %v359
        %v376 = vpack.c.b16 %v362, %v361
        %v377 = vpack.c.b16 %v364, %v363
        %v378 = vpack.c.b16 %v366, %v365
        %v379 = vpack.c.b16 %v368, %v367
        %v380 = vpack.c.b16 %v370, %v369
        %v381 = vpack.c.b16 %v372, %v371
        %v382 = vpack.c.b16 %v374, %v373
        %391 = vmatprep.subr.bf16.mxu0 0
        %392 = vmatpush1.bf16.msra.mxu0 %v382
        %393 = vmatprep.subr.bf16.mxu0 0
        %394 = vmatpush1.bf16.msra.mxu0 %v381
        %395 = vmatprep.subr.bf16.mxu0 0
        %396 = vmatpush1.bf16.msra.mxu0 %v380
        %397 = vmatprep.subr.bf16.mxu0 0
        %398 = vmatpush1.bf16.msra.mxu0 %v379
        %399 = vmatprep.subr.bf16.mxu0 0
        %400 = vmatpush1.bf16.msra.mxu0 %v378
        %401 = vmatprep.subr.bf16.mxu0 0
        %402 = vmatpush1.bf16.msra.mxu0 %v377
        %403 = vmatprep.subr.bf16.mxu0 0
        %404 = vmatpush1.bf16.msra.mxu0 %v376
        %405 = vmatprep.subr.bf16.mxu0 0
        %406 = vmatpush1.bf16.msra.mxu0 %v375
        %407 = vmatprep.subr.bf16.mxu0 0
        %408 = vmatpush2.bf16.msra.mxu0 0
        %409 = vmatprep.subr.bf16.mxu0 0
        %410 = vmatpush2.bf16.msra.mxu0 0
        %411 = vmatprep.subr.bf16.mxu0 0
        %412 = vmatpush2.bf16.msra.mxu0 0
        %413 = vmatprep.subr.bf16.mxu0 0
        %414 = vmatpush2.bf16.msra.mxu0 0
        %415 = vmatprep.subr.bf16.mxu0 0
        %416 = vmatpush2.bf16.msra.mxu0 0
        %417 = vmatprep.subr.bf16.mxu0 0
        %418 = vmatpush2.bf16.msra.mxu0 0
        %419 = vmatprep.subr.bf16.mxu0 0
        %420 = vmatpush2.bf16.msra.mxu0 0
        %421 = vmatprep.subr.bf16.mxu0 0
        %422 = vmatpush2.bf16.msra.mxu0 0
        %423 = vmatprep.mubr.bf16.mxu0 0
        %424 = vmatmul.mubr.bf16.gmra.mxu0 %v319
        %v425 = vpop.f32.mrf.mxu0
        %v426 = vadd.f32 %v341, %v425
        %v427 = vpop.f32.mrf.mxu0
        %v428 = vpop.f32.mrf.mxu0
        %v429 = vadd.f32 %v341, %v428
        %v430 = vpop.f32.mrf.mxu0
        %431 = vdwg.mxu0
        %v432 = vmax.f32 %v426, 0.0
        %v433 = vmax.f32 %v429, 0.0
        %v434 = vpack.c.bf16 %v433, %v432
        %v435 = vld [vmem:[#allocation8] sm:$0xf]
        %v436 = vld [vmem:[#allocation8 + $0x4] sm:$0xf]
        %v437 = vld [vmem:[#allocation8 + $0x8] sm:$0xf]
        %v438 = vld [vmem:[#allocation8 + $0xc] sm:$0xf]
        %v439 = vld [vmem:[#allocation8 + $0x10] sm:$0xf]
        %v440 = vld [vmem:[#allocation8 + $0x14] sm:$0xf]
        %v441 = vld [vmem:[#allocation8 + $0x18] sm:$0xf]
        %v442 = vld [vmem:[#allocation8 + $0x1c] sm:$0xf]
        %v443 = vld [vmem:[#allocation8 + $0x20] sm:$0xf]
        %v444 = vld [vmem:[#allocation8 + $0x24] sm:$0xf]
        %v445 = vld [vmem:[#allocation8 + $0x28] sm:$0xf]
        %v446 = vld [vmem:[#allocation8 + $0x2c] sm:$0xf]
        %v447 = vld [vmem:[#allocation8 + $0x30] sm:$0xf]
        %v448 = vld [vmem:[#allocation8 + $0x34] sm:$0xf]
        %v449 = vld [vmem:[#allocation8 + $0x38] sm:$0xf]
        %v450 = vld [vmem:[#allocation8 + $0x3c] sm:$0xf]
        %v451 = vld [vmem:[%s5] sm:$0x1]
        %v453 = vlaneseq
        %v454 = vshrl.u32 %v453, 7
        %v455 = vsub.s32 0, %v454
        %v456 = vrot.slane %v451, %v455
        %v474 = vunpack.c.l.b16 %v435
        %v475 = vunpack.c.l.b16 %v436
        %v476 = vunpack.c.l.b16 %v437
        %v477 = vunpack.c.l.b16 %v438
        %v478 = vunpack.c.l.b16 %v439
        %v479 = vunpack.c.l.b16 %v440
        %v480 = vunpack.c.l.b16 %v441
        %v481 = vunpack.c.l.b16 %v442
        %v482 = vunpack.c.l.b16 %v443
        %v483 = vunpack.c.l.b16 %v444
        %v484 = vunpack.c.l.b16 %v445
        %v485 = vunpack.c.l.b16 %v446
        %v486 = vunpack.c.l.b16 %v447
        %v487 = vunpack.c.l.b16 %v448
        %v488 = vunpack.c.l.b16 %v449
        %v489 = vunpack.c.l.b16 %v450
        %v490 = vpack.c.b16 %v475, %v474
        %v491 = vpack.c.b16 %v477, %v476
        %v492 = vpack.c.b16 %v479, %v478
        %v493 = vpack.c.b16 %v481, %v480
        %v494 = vpack.c.b16 %v483, %v482
        %v495 = vpack.c.b16 %v485, %v484
        %v496 = vpack.c.b16 %v487, %v486
        %v497 = vpack.c.b16 %v489, %v488
        %506 = vmatprep.subr.bf16.mxu0 0
        %507 = vmatpush1.bf16.msra.mxu0 %v497
        %508 = vmatprep.subr.bf16.mxu0 0
        %509 = vmatpush1.bf16.msra.mxu0 %v496
        %510 = vmatprep.subr.bf16.mxu0 0
        %511 = vmatpush1.bf16.msra.mxu0 %v495
        %512 = vmatprep.subr.bf16.mxu0 0
        %513 = vmatpush1.bf16.msra.mxu0 %v494
        %514 = vmatprep.subr.bf16.mxu0 0
        %515 = vmatpush1.bf16.msra.mxu0 %v493
        %516 = vmatprep.subr.bf16.mxu0 0
        %517 = vmatpush1.bf16.msra.mxu0 %v492
        %518 = vmatprep.subr.bf16.mxu0 0
        %519 = vmatpush1.bf16.msra.mxu0 %v491
        %520 = vmatprep.subr.bf16.mxu0 0
        %521 = vmatpush1.bf16.msra.mxu0 %v490
        %522 = vmatprep.subr.bf16.mxu0 0
        %523 = vmatpush2.bf16.msra.mxu0 0
        %524 = vmatprep.subr.bf16.mxu0 0
        %525 = vmatpush2.bf16.msra.mxu0 0
        %526 = vmatprep.subr.bf16.mxu0 0
        %527 = vmatpush2.bf16.msra.mxu0 0
        %528 = vmatprep.subr.bf16.mxu0 0
        %529 = vmatpush2.bf16.msra.mxu0 0
        %530 = vmatprep.subr.bf16.mxu0 0
        %531 = vmatpush2.bf16.msra.mxu0 0
        %532 = vmatprep.subr.bf16.mxu0 0
        %533 = vmatpush2.bf16.msra.mxu0 0
        %534 = vmatprep.subr.bf16.mxu0 0
        %535 = vmatpush2.bf16.msra.mxu0 0
        %536 = vmatprep.subr.bf16.mxu0 0
        %537 = vmatpush2.bf16.msra.mxu0 0
        %538 = vmatprep.mubr.bf16.mxu0 0
        %539 = vmatmul.mubr.bf16.gmra.mxu0 %v434
        %v540 = vpop.f32.mrf.mxu0
        %v541 = vadd.f32 %v456, %v540
        %v542 = vpop.f32.mrf.mxu0
        %v543 = vpop.f32.mrf.mxu0
        %v544 = vadd.f32 %v456, %v543
        %v545 = vpop.f32.mrf.mxu0
        %546 = vdwg.mxu0
        %s547 = sld [smem:[#allocation2]]
        %v548 = vstv %s547
        %v549 = vmul.f32 %v541, %v548
        %v550 = vmul.f32 %v544, %v548
        %v551 = vadd.f32 %v317, %v549
        %v552 = vadd.f32 %v318, %v550
        %553 = vst [vmem:[%s305] sm:$0xff] %v551
        %554 = vst [vmem:[%s305 + $0x8] sm:$0xff] %v552
        %s555 = sand.u32 %s164, 1
        %s556 = scalar_lea.sflag [#allocation5], %s555
        %s557 = sand.u32 %s164, 1
        %s558 = smul.addr %s557, 16
        %s559 = scalar_lea.vmem [#allocation9], %s558
        // Predicated region
        $region57: #{tpu_custom_call.1} parent=43 // pred_check
          %p560 = pneg %p174
        $region58: #{tpu_custom_call.1} parent=43 // pred_check_branch
          %562 = sbr.rel (%p560) target = $region60
        $region59: #{tpu_custom_call.1} parent=43 // pred_region
          %s563 = smul.u32 2, %s25
          %s564 = ssub.s32 3, %s563
          %p565 = scmp.lt.s32.totalorder %s564, 2
          %s566 = scalar_select %p565, %s564, 2
          %s567 = smul.u32 128, %s566
          %s569 = ssub.s32 256, %s567
          %570 = vsyncadd %s556, %s569
          %p571 = scmp.ne.s32.totalorder 0, %s567
          %s572 = smul.addr %s563, 128
          %s573 = scalar_lea.hbm %s6, %s572
          %s574 = smul.u32 8, %s566
          %s575 = sshll.u32 %s559, 4
          %s576 = int_to_ptr.vmem [resolvable:$true] %s575
          %s577 = sshll.u32 %s574, 4
          %581 = dma.vmem_to_hbm [thread:$0]  (%p571), %s576, %s577, %s573, %s556, 128, 128, 8
        $region60: #{tpu_custom_call.1} parent=43 // pred_fallthru
          _
      $region44: #{tpu_custom_call.1} parent=5 // pred_fallthru
        _
      %p582 = scmp.le.s32.totalorder 2, %s20
      // Predicated region
      $region61: #{tpu_custom_call.1} parent=5 // pred_check
        %p583 = pneg %p582
      $region62: #{tpu_custom_call.1} parent=5 // pred_check_branch
        %585 = sbr.rel (%p583) target = $region64
      $region63: #{tpu_custom_call.1} parent=5 // pred_region
        %s586 = ssub.s32 %s20, 2
        // Predicated region
        $region65: #{tpu_custom_call.1} parent=63 // pred_check
          %p587 = pneg %p180
        $region66: #{tpu_custom_call.1} parent=63 // pred_check_branch
          %589 = sbr.rel (%p587) target = $region68
        $region67: #{tpu_custom_call.1} parent=63 // pred_region
          %s590 = sand.u32 %s165, 1
          %s591 = scalar_lea.sflag [#allocation5], %s590
          %s592 = sand.u32 %s165, 1
          %s593 = smul.addr %s592, 16
          %s594 = scalar_lea.vmem [#allocation9], %s593
          %595 = dma.done %s591, 256
        $region68: #{tpu_custom_call.1} parent=63 // pred_fallthru
          _
      $region64: #{tpu_custom_call.1} parent=5 // pred_fallthru
        _
    $region6: #{tpu_custom_call.1} parent=1 // loop_footer
      %s24 = sadd.s32 1, %s20
    $region7: #{tpu_custom_call.1} parent=1 // loop_footer_branch
      %19 = sbr.rel target = $region3
    $region8: #{tpu_custom_call.1} parent=1 // loop_exit
      _
    %596 = vsyncpa [#allocation4], 1
    %s597 = scalar_lea.sflag [#allocation4], 1
    %598 = vsyncpa %s597, 1
    %599 = vsyncpa [#allocation7], 1
    %600 = vsyncpa [#allocation5], 1
    %s601 = scalar_lea.sflag [#allocation5], 1
    %602 = vsyncpa %s601, 1

</llo_original>
